<compile_context>
chip_gen: v6e
topology: v6e:2x2x1
jax: 0.10.0
libtpu: 0.0.40
codegen_flags: <defaults>
</compile_context>

<pallas_src>
import jax
import jax.numpy as jnp
from jax.experimental import pallas as pl
from jax.experimental.pallas import tpu as pltpu

EPS = 1e-5


def _fused_kernel(patches_ref, xres_ref, w_ref, b_ref, g_ref, beta_ref, o_ref):
    """conv (tiny contraction) + bias + residual + BatchNorm, single store.

    patches_ref: (K, M)  im2col patches, K = CIN*KH*KW, M = N*HO*WO  (VMEM)
    xres_ref:    (C, M)  center-cropped residual                     (VMEM)
    w_ref:       (C, K)  conv weight                                 (VMEM)
    b_ref/g_ref/beta_ref: (C, 1) conv bias / BN gamma / BN beta      (VMEM)
    o_ref:       (C, M)  output                                      (VMEM)
    """
    p = patches_ref[...]                                   # (K, M)
    wt = w_ref[...]                                        # (C, K)

    # Contraction over K, stacked over all output channels at once.
    # (C, K, 1) * (1, K, M) -> sum over K -> (C, M); exact f32 on VPU/XLU
    # (problem is far below MXU tile size, so no matmul precision concerns).
    z = jnp.sum(wt[:, :, None] * p[None, :, :], axis=1)    # (C, M)

    # Bias + residual: one vectorized add each (bias broadcasts along lanes).
    z = z + b_ref[...] + xres_ref[...]

    # BatchNorm2d, training-mode batch statistics (biased variance),
    # per channel = per row, reduced along the lane axis.
    mean = jnp.mean(z, axis=1, keepdims=True)
    c = z - mean
    var = jnp.mean(c * c, axis=1, keepdims=True)

    # Single lane-dense store for all channels.
    o_ref[...] = c * jax.lax.rsqrt(var + EPS) * g_ref[...] + beta_ref[...]


def conv_add_bn(x, w, b, gamma, beta):
    N, CIN, H, W = x.shape
    COUT, CIN_w, KH, KW = w.shape
    assert CIN == CIN_w, "weight/input channel mismatch"
    # The residual add pairs output channel co with input channel co.
    assert CIN == COUT, "residual add requires CIN == COUT"
    HO, WO = H - KH + 1, W - KW + 1
    M = N * HO * WO
    K = CIN * KH * KW

    # ---- layout plumbing (zero-FLOP, stays in the XLA wrapper) --------------
    # im2col patches: row r = (ci*KH + kh)*KW + kw, col m = n*HO*WO + ho*WO + wo
    cols = []
    for ci in range(CIN):
        for kh in range(KH):
            for kw in range(KW):
                cols.append(x[:, ci, kh:kh + HO, kw:kw + WO].reshape(1, M))
    patches = jnp.concatenate(cols, axis=0)                        # (K, M)

    # TODO(synk): original forward `conv(x) + x` has mismatched shapes
    # ((N,3,4,4) + (N,3,6,6)) and raises in PyTorch; we add the
    # receptive-field-aligned center crop of x instead.
    xres = (x[:, :, KH // 2:KH // 2 + HO, KW // 2:KW // 2 + WO]
            .transpose(1, 0, 2, 3).reshape(COUT, M))               # (C, M)

    w2d = w.reshape(COUT, K)                                       # (C, K)

    out2d = pl.pallas_call(
        _fused_kernel,
        out_shape=jax.ShapeDtypeStruct((COUT, M), jnp.float32),
        in_specs=[pl.BlockSpec(memory_space=pltpu.MemorySpace.VMEM)] * 6,
        out_specs=pl.BlockSpec(memory_space=pltpu.MemorySpace.VMEM),
    )(patches, xres, w2d,
      b.reshape(COUT, 1), gamma.reshape(COUT, 1), beta.reshape(COUT, 1))

    # back to NCHW outside the pallas_call
    return out2d.reshape(COUT, N, HO, WO).transpose(1, 0, 2, 3)


def reference(x, w, b, gamma, beta):
    """Pure-JAX reference of the same (shape-corrected) computation."""
    conv = jax.lax.conv_general_dilated(
        x, w, window_strides=(1, 1), padding="VALID",
        dimension_numbers=("NCHW", "OIHW", "NCHW"),
        precision=jax.lax.Precision.HIGHEST)
    conv = conv + b[None, :, None, None]
    HO, WO = conv.shape[2], conv.shape[3]
    z = conv + x[:, :, 1:1 + HO, 1:1 + WO]
    mean = jnp.mean(z, axis=(0, 2, 3), keepdims=True)
    var = jnp.mean((z - mean) ** 2, axis=(0, 2, 3), keepdims=True)
    return ((z - mean) * jax.lax.rsqrt(var + EPS)
            * gamma[None, :, None, None] + beta[None, :, None, None])


if __name__ == "__main__":
    key = jax.random.PRNGKey(0)
    kx, kw, kb = jax.random.split(key, 3)

    # same input shape as the PyTorch script: (1, 3, 6, 6)
    x = jax.random.normal(kx, (1, 3, 6, 6), dtype=jnp.float32)

    # deterministic parameter init (synthetic, not a checkpoint)
    w = jax.random.normal(kw, (3, 3, 3, 3), dtype=jnp.float32) * 0.1  # Conv2d weight
    b = jax.random.normal(kb, (3,), dtype=jnp.float32) * 0.1          # Conv2d bias
    gamma = jnp.ones((3,), dtype=jnp.float32)                          # BN weight
    beta = jnp.zeros((3,), dtype=jnp.float32)                          # BN bias

    out = conv_add_bn(x, w, b, gamma, beta)
    out = jax.block_until_ready(out)

    ref = reference(x, w, b, gamma, beta)
    assert out.shape == (1, 3, 4, 4)
    assert jnp.allclose(out, ref, atol=1e-4, rtol=1e-4), "kernel/reference mismatch"

    print("KERNEL_OK")
</pallas_src>

<mosaic_0001>
module attributes {stable_mosaic.version = 11 : i64} {
  func.func @_fused_kernel(%arg0: memref<27x16xf32, #tpu.memory_space<vmem>>, %arg1: memref<3x16xf32, #tpu.memory_space<vmem>>, %arg2: memref<3x27xf32, #tpu.memory_space<vmem>>, %arg3: memref<3x1xf32, #tpu.memory_space<vmem>>, %arg4: memref<3x1xf32, #tpu.memory_space<vmem>>, %arg5: memref<3x1xf32, #tpu.memory_space<vmem>>, %arg6: memref<3x16xf32, #tpu.memory_space<vmem>>) attributes {dimension_semantics = [], scalar_prefetch = 0 : i64, scratch_operands = 0 : i64, tpu.core_type = #tpu.core_type<tc>} {
    %c0 = arith.constant 0 : index
    %c0_0 = arith.constant 0 : index
    %0 = vector.load %arg0[%c0, %c0_0] : memref<27x16xf32, #tpu.memory_space<vmem>>, vector<27x16xf32>
    %c0_1 = arith.constant 0 : index
    %c0_2 = arith.constant 0 : index
    %1 = vector.load %arg2[%c0_1, %c0_2] : memref<3x27xf32, #tpu.memory_space<vmem>>, vector<3x27xf32>
    %2 = vector.shape_cast %1 : vector<3x27xf32> to vector<3x27x1xf32>
    %3 = vector.shape_cast %0 : vector<27x16xf32> to vector<1x27x16xf32>
    %4 = vector.broadcast %2 : vector<3x27x1xf32> to vector<3x27x16xf32>
    %5 = vector.broadcast %3 : vector<1x27x16xf32> to vector<3x27x16xf32>
    %6 = arith.mulf %4, %5 : vector<3x27x16xf32>
    %cst = arith.constant dense<0.000000e+00> : vector<3x16xf32>
    %7 = vector.multi_reduction <add>, %6, %cst [1] : vector<3x27x16xf32> to vector<3x16xf32>
    %c0_3 = arith.constant 0 : index
    %c0_4 = arith.constant 0 : index
    %8 = vector.load %arg3[%c0_3, %c0_4] : memref<3x1xf32, #tpu.memory_space<vmem>>, vector<3x1xf32>
    %9 = vector.broadcast %8 : vector<3x1xf32> to vector<3x16xf32>
    %10 = arith.addf %7, %9 : vector<3x16xf32>
    %c0_5 = arith.constant 0 : index
    %c0_6 = arith.constant 0 : index
    %11 = vector.load %arg1[%c0_5, %c0_6] : memref<3x16xf32, #tpu.memory_space<vmem>>, vector<3x16xf32>
    %12 = arith.addf %10, %11 : vector<3x16xf32>
    %cst_7 = arith.constant dense<0.000000e+00> : vector<3xf32>
    %13 = vector.multi_reduction <add>, %12, %cst_7 [1] : vector<3x16xf32> to vector<3xf32>
    %14 = vector.shape_cast %13 : vector<3xf32> to vector<3x1xf32>
    %cst_8 = arith.constant 1.600000e+01 : f32
    %15 = vector.broadcast %cst_8 : f32 to vector<3x1xf32>
    %16 = arith.divf %14, %15 : vector<3x1xf32>
    %17 = vector.broadcast %16 : vector<3x1xf32> to vector<3x16xf32>
    %18 = arith.subf %12, %17 : vector<3x16xf32>
    %19 = arith.mulf %18, %18 : vector<3x16xf32>
    %cst_9 = arith.constant dense<0.000000e+00> : vector<3xf32>
    %20 = vector.multi_reduction <add>, %19, %cst_9 [1] : vector<3x16xf32> to vector<3xf32>
    %21 = vector.shape_cast %20 : vector<3xf32> to vector<3x1xf32>
    %cst_10 = arith.constant 1.600000e+01 : f32
    %22 = vector.broadcast %cst_10 : f32 to vector<3x1xf32>
    %23 = arith.divf %21, %22 : vector<3x1xf32>
    %cst_11 = arith.constant 9.99999974E-6 : f32
    %24 = vector.broadcast %cst_11 : f32 to vector<3x1xf32>
    %25 = arith.addf %23, %24 : vector<3x1xf32>
    %26 = math.rsqrt %25 : vector<3x1xf32>
    %27 = vector.broadcast %26 : vector<3x1xf32> to vector<3x16xf32>
    %28 = arith.mulf %18, %27 : vector<3x16xf32>
    %c0_12 = arith.constant 0 : index
    %c0_13 = arith.constant 0 : index
    %29 = vector.load %arg4[%c0_12, %c0_13] : memref<3x1xf32, #tpu.memory_space<vmem>>, vector<3x1xf32>
    %30 = vector.broadcast %29 : vector<3x1xf32> to vector<3x16xf32>
    %31 = arith.mulf %28, %30 : vector<3x16xf32>
    %c0_14 = arith.constant 0 : index
    %c0_15 = arith.constant 0 : index
    %32 = vector.load %arg5[%c0_14, %c0_15] : memref<3x1xf32, #tpu.memory_space<vmem>>, vector<3x1xf32>
    %33 = vector.broadcast %32 : vector<3x1xf32> to vector<3x16xf32>
    %34 = arith.addf %31, %33 : vector<3x16xf32>
    %c0_16 = arith.constant 0 : index
    %c0_17 = arith.constant 0 : index
    %35 = vector.load %arg6[%c0_16, %c0_17] : memref<3x16xf32, #tpu.memory_space<vmem>>, vector<3x16xf32>
    tpu.vector_store %arg6[%c0_16, %c0_17], %34 {strides = array<i32>} : memref<3x16xf32, #tpu.memory_space<vmem>>, vector<3x16xf32>,
    return
  }
}

</mosaic_0001>

<llo_original>
// kernel: tpu_custom_call.1
$region0: #{tpu_custom_call.1}
  #allocation0 [shape = 'u32[]', space=smem, size = 0x4, offset = 0x4, fixed_abs, tag = 'smem constant byte address 0x4 - core index']
  #allocation1 [shape = 'u32[144,128]{1,0:T(1,128)}', space=vmem, size = 0x12000, scoped, tag = 'internal scratch']
  %s0 = inlined_call_operand.vmem [shape: f32[27,16], index: 0, kind: input, shape index: {}]
  %s1 = inlined_call_operand.vmem [shape: f32[3,16], index: 1, kind: input, shape index: {}]
  %s2 = inlined_call_operand.vmem [shape: f32[3,27], index: 2, kind: input, shape index: {}]
  %s3 = inlined_call_operand.vmem [shape: f32[3,1], index: 3, kind: input, shape index: {}]
  %s4 = inlined_call_operand.vmem [shape: f32[3,1], index: 4, kind: input, shape index: {}]
  %s5 = inlined_call_operand.vmem [shape: f32[3,1], index: 5, kind: input, shape index: {}]
  %s6 = inlined_call_operand.hbm [shape: f32[3,16], index: 6, kind: output, shape index: {}]
  %s7 = sld [smem:[#allocation0]]
  $region34: #{tpu_custom_call.1} parent=0
    _
  %s9 = ssub.s32 1, %s7
  %s10 = scalar_select 0, %s9, %s7
  $region1: #{tpu_custom_call.1} parent=0
    #allocation2 [shape = 'u8[2048]{0}', space=vmem, size = 0x800, scoped, tag = 'output window, operand 0, single buffered']
    #allocation3 [shape = 's32[1]{0}', space=sflag, size = 0x4, scoped, tag = 'scoped memory for tpu_custom_call.1']
    %11 = vsyncpa [#allocation3], 0
    // Predicated region
    $region2: #{tpu_custom_call.1} parent=1 // pred_check
      _
    $region3: #{tpu_custom_call.1} parent=1 // pred_check_branch
      %13 = sbr.rel (0) target = $region5
    $region4: #{tpu_custom_call.1} parent=1 // pred_region
      _
    $region5: #{tpu_custom_call.1} parent=1 // pred_fallthru
      _
    // Predicated region
    $region6: #{tpu_custom_call.1} parent=1 // pred_check
      _
    $region7: #{tpu_custom_call.1} parent=1 // pred_check_branch
      %15 = sbr.rel (0) target = $region9
    $region8: #{tpu_custom_call.1} parent=1 // pred_region
      _
    $region9: #{tpu_custom_call.1} parent=1 // pred_fallthru
      _
    // Predicated region
    $region10: #{tpu_custom_call.1} parent=1 // pred_check
      _
    $region11: #{tpu_custom_call.1} parent=1 // pred_check_branch
      %17 = sbr.rel (0) target = $region13
    $region12: #{tpu_custom_call.1} parent=1 // pred_region
      _
    $region13: #{tpu_custom_call.1} parent=1 // pred_fallthru
      _
    // Predicated region
    $region14: #{tpu_custom_call.1} parent=1 // pred_check
      _
    $region15: #{tpu_custom_call.1} parent=1 // pred_check_branch
      %19 = sbr.rel (0) target = $region17
    $region16: #{tpu_custom_call.1} parent=1 // pred_region
      _
    $region17: #{tpu_custom_call.1} parent=1 // pred_fallthru
      _
    // Predicated region
    $region18: #{tpu_custom_call.1} parent=1 // pred_check
      _
    $region19: #{tpu_custom_call.1} parent=1 // pred_check_branch
      %21 = sbr.rel (0) target = $region21
    $region20: #{tpu_custom_call.1} parent=1 // pred_region
      _
    $region21: #{tpu_custom_call.1} parent=1 // pred_fallthru
      _
    // Predicated region
    $region22: #{tpu_custom_call.1} parent=1 // pred_check
      _
    $region23: #{tpu_custom_call.1} parent=1 // pred_check_branch
      %23 = sbr.rel (0) target = $region25
    $region24: #{tpu_custom_call.1} parent=1 // pred_region
      _
    $region25: #{tpu_custom_call.1} parent=1 // pred_fallthru
      _
    %v24 = vld [vmem:[%s0] sm:$0xff]
    %v25 = vld [vmem:[%s0 + $0x8] sm:$0xff]
    %v26 = vld [vmem:[%s0 + $0x10] sm:$0xff]
    %v27 = vld [vmem:[%s0 + $0x18] sm:$0x7]
    %v28 = vld [vmem:[%s2] sm:$0x7]
    %v29 = vlaneseq
    %v30 = vshrl.u32 %v29, 7
    %v31 = vsub.s32 0, %v30
    %v32 = vrot.slane %v28, %v31
    %34 = vbcast.lane.b32.xlu0 %v32, 256
    %v35 = vpop.permute.xlu0 %34
    %s37 = sor.u32 256, 8
    %38 = vbcast.lane.b32.xlu0 %v32, %s37
    %v39 = vpop.permute.xlu0 %38
    %s41 = sor.u32 256, 16
    %42 = vbcast.lane.b32.xlu0 %v32, %s41
    %v43 = vpop.permute.xlu0 %42
    %s45 = sor.u32 256, 24
    %46 = vbcast.lane.b32.xlu0 %v32, %s45
    %v47 = vpop.permute.xlu0 %46
    %v48 = vlaneseq
    %v49 = vshrl.u32 %v48, 7
    %v50 = vsub.s32 1, %v49
    %v51 = vrot.slane %v28, %v50
    %53 = vbcast.lane.b32.xlu0 %v51, 256
    %v54 = vpop.permute.xlu0 %53
    %s56 = sor.u32 256, 8
    %57 = vbcast.lane.b32.xlu0 %v51, %s56
    %v58 = vpop.permute.xlu0 %57
    %s60 = sor.u32 256, 16
    %61 = vbcast.lane.b32.xlu0 %v51, %s60
    %v62 = vpop.permute.xlu0 %61
    %s64 = sor.u32 256, 24
    %65 = vbcast.lane.b32.xlu0 %v51, %s64
    %v66 = vpop.permute.xlu0 %65
    %v67 = vlaneseq
    %v68 = vshrl.u32 %v67, 7
    %v69 = vsub.s32 2, %v68
    %v70 = vrot.slane %v28, %v69
    %72 = vbcast.lane.b32.xlu0 %v70, 256
    %v73 = vpop.permute.xlu0 %72
    %s75 = sor.u32 256, 8
    %76 = vbcast.lane.b32.xlu0 %v70, %s75
    %v77 = vpop.permute.xlu0 %76
    %s79 = sor.u32 256, 16
    %80 = vbcast.lane.b32.xlu0 %v70, %s79
    %v81 = vpop.permute.xlu0 %80
    %s83 = sor.u32 256, 24
    %84 = vbcast.lane.b32.xlu0 %v70, %s83
    %v85 = vpop.permute.xlu0 %84
    %v86 = vmul.f32 %v35, %v24
    %v87 = vmul.f32 %v39, %v25
    %v88 = vmul.f32 %v43, %v26
    %v89 = vmul.f32 %v47, %v27
    %v90 = vmul.f32 %v54, %v24
    %v91 = vmul.f32 %v58, %v25
    %v92 = vmul.f32 %v62, %v26
    %v93 = vmul.f32 %v66, %v27
    %v94 = vmul.f32 %v73, %v24
    %v95 = vmul.f32 %v77, %v25
    %v96 = vmul.f32 %v81, %v26
    %v97 = vmul.f32 %v85, %v27
    %vm98 = vcmask 130048
    %v99 = vsel %vm98, %v86, 0.0
    %v100 = vsel %vm98, %v87, 0.0
    %v101 = vadd.f32 %v99, %v100
    %v102 = vsel %vm98, %v88, 0.0
    %v103 = vadd.f32 %v101, %v102
    %vm104 = vcmask 124928
    %v105 = vsel %vm104, %v89, 0.0
    %v106 = vadd.f32 %v103, %v105
    %v107 = vrot.slane %v106, 4
    %v108 = vadd.f32 %v106, %v107
    %v109 = vrot.slane %v108, 2
    %v110 = vadd.f32 %v108, %v109
    %v111 = vrot.slane %v110, 1
    %v112 = vadd.f32 %v110, %v111
    %v113 = vsel %vm98, %v90, 0.0
    %v114 = vsel %vm98, %v91, 0.0
    %v115 = vadd.f32 %v113, %v114
    %v116 = vsel %vm98, %v92, 0.0
    %v117 = vadd.f32 %v115, %v116
    %v118 = vsel %vm104, %v93, 0.0
    %v119 = vadd.f32 %v117, %v118
    %v120 = vrot.slane %v119, 4
    %v121 = vadd.f32 %v119, %v120
    %v122 = vrot.slane %v121, 2
    %v123 = vadd.f32 %v121, %v122
    %v124 = vrot.slane %v123, 1
    %v125 = vadd.f32 %v123, %v124
    %v126 = vsel %vm98, %v94, 0.0
    %v127 = vsel %vm98, %v95, 0.0
    %v128 = vadd.f32 %v126, %v127
    %v129 = vsel %vm98, %v96, 0.0
    %v130 = vadd.f32 %v128, %v129
    %v131 = vsel %vm104, %v97, 0.0
    %v132 = vadd.f32 %v130, %v131
    %v133 = vrot.slane %v132, 4
    %v134 = vadd.f32 %v132, %v133
    %v135 = vrot.slane %v134, 2
    %v136 = vadd.f32 %v134, %v135
    %v137 = vrot.slane %v136, 1
    %v138 = vadd.f32 %v136, %v137
    %v139 = vld [vmem:[%s3] sm:$0x7]
    %141 = vset.pattern.permute.xlu0 0
    %142 = vperm.xlu0 %141, %v139
    %v143 = vpop.permute.xlu0 %142
    %v144 = vrot.slane %v143, 1
    %v145 = vrot.slane %v143, 2
    %v149 = vadd.f32 %v112, %v143
    %v150 = vadd.f32 %v125, %v144
    %v151 = vadd.f32 %v138, %v145
    %v152 = vld [vmem:[%s1] sm:$0x7]
    %v154 = vrot.slane %v152, 1
    %v155 = vrot.slane %v152, 2
    %v159 = vadd.f32 %v149, %v152
    %v160 = vadd.f32 %v150, %v154
    %v161 = vadd.f32 %v151, %v155
    %v165 = vrot.slane %v160, 7
    %vm166 = vcmask 1041409
    %v167 = vsel %vm166, %v165, %v159
    %v168 = vrot.slane %v161, 6
    %vm169 = vcmask 1042434
    %v170 = vsel %vm169, %v168, %v167
    %v172 = vsel %vm104, %v170, 0.0
    %173 = vadd.xlane.f32.xlu0 %v172
    %v174 = vpop.xlane.xlu0 %173
    %v175 = vrcp.pop 16.0
    %v176 = vmul.f32 %v174, %v175
    %v178 = vrot.slane %v176, 1
    %v179 = vrot.slane %v176, 2
    %v183 = vsub.f32 %v159, %v176
    %v184 = vsub.f32 %v160, %v178
    %v185 = vsub.f32 %v161, %v179
    %v186 = vmul.f32 %v183, %v183
    %v187 = vmul.f32 %v184, %v184
    %v188 = vmul.f32 %v185, %v185
    %v192 = vrot.slane %v187, 7
    %v193 = vsel %vm166, %v192, %v186
    %v194 = vrot.slane %v188, 6
    %v195 = vsel %vm169, %v194, %v193
    %v197 = vsel %vm104, %v195, 0.0
    %198 = vadd.xlane.f32.xlu0 %v197
    %v199 = vpop.xlane.xlu0 %198
    %v200 = vmul.f32 %v199, %v175
    %v201 = vadd.f32 %v200, 1e-05
    %v202 = vrsqrt.pop %v201
    %v204 = vrot.slane %v202, 1
    %v205 = vrot.slane %v202, 2
    %v209 = vmul.f32 %v183, %v202
    %v210 = vmul.f32 %v184, %v204
    %v211 = vmul.f32 %v185, %v205
    %v212 = vld [vmem:[%s4] sm:$0x7]
    %214 = vset.pattern.permute.xlu0 0
    %215 = vperm.xlu0 %214, %v212
    %v216 = vpop.permute.xlu0 %215
    %v217 = vrot.slane %v216, 1
    %v218 = vrot.slane %v216, 2
    %v222 = vmul.f32 %v209, %v216
    %v223 = vmul.f32 %v210, %v217
    %v224 = vmul.f32 %v211, %v218
    %v225 = vld [vmem:[%s5] sm:$0x7]
    %227 = vset.pattern.permute.xlu0 0
    %228 = vperm.xlu0 %227, %v225
    %v229 = vpop.permute.xlu0 %228
    %v230 = vrot.slane %v229, 1
    %v231 = vrot.slane %v229, 2
    %v235 = vadd.f32 %v222, %v229
    %v236 = vadd.f32 %v223, %v230
    %v237 = vadd.f32 %v224, %v231
    %v241 = vrot.slane %v236, 7
    %v242 = vsel %vm166, %v241, %v235
    %v243 = vrot.slane %v237, 6
    %v244 = vsel %vm169, %v243, %v242
    %246 = vst.msk [vmem:[#allocation2] sm:$0x7] %vm104, %v244
    // Predicated region
    $region26: #{tpu_custom_call.1} parent=1 // pred_check
      _
    $region27: #{tpu_custom_call.1} parent=1 // pred_check_branch
      %248 = sbr.rel (0) target = $region29
    $region28: #{tpu_custom_call.1} parent=1 // pred_region
      %s250 = ssub.s32 64, 64
      %251 = vsyncadd [#allocation3], %s250
      %s253 = sshll.u32 [#allocation2], 4
      %s254 = int_to_ptr.vmem [resolvable:$true] %s253
      %256 = dma.vmem_to_hbm [thread:$0]  %s254, 64, %s6, [#allocation3]
    $region29: #{tpu_custom_call.1} parent=1 // pred_fallthru
      _
    // Predicated region
    $region30: #{tpu_custom_call.1} parent=1 // pred_check
      _
    $region31: #{tpu_custom_call.1} parent=1 // pred_check_branch
      %258 = sbr.rel (0) target = $region33
    $region32: #{tpu_custom_call.1} parent=1 // pred_region
      %259 = dma.done [#allocation3], 64
    $region33: #{tpu_custom_call.1} parent=1 // pred_fallthru
      _
    %260 = vsyncpa [#allocation3], 1

</llo_original>
